<compile_context>
chip_gen: v5e
topology: v5e:2x2
jax: 0.10.0
libtpu: 0.0.40
codegen_flags: <defaults>
</compile_context>

<pallas_src>
import functools
import math

import jax
import jax.numpy as jnp
from jax.experimental import pallas as pl
from jax.experimental.pallas import tpu as pltpu


# ---------------------------------------------------------------------------
# Hardware-aware sizing helpers
# ---------------------------------------------------------------------------
@functools.lru_cache(maxsize=None)
def _vmem_capacity_bytes():
    """Physical VMEM per TensorCore; conservative fallback = v7x (64 MiB)."""
    try:
        cap = int(getattr(pltpu.get_tpu_info(), "vmem_capacity_bytes", 0))
        if cap > 0:
            return cap
    except Exception:
        pass
    return 64 * 1024 * 1024


@functools.lru_cache(maxsize=None)
def _vmem_limit_bytes():
    # Half the physical VMEM, clamped to [32 MiB, 64 MiB]:
    #   v5e/v6e (128 MiB) -> 64 MiB scoped limit, v7x (64 MiB) -> 32 MiB.
    return int(min(max(_vmem_capacity_bytes() // 2, 32 * 1024 * 1024),
                   64 * 1024 * 1024))


@functools.lru_cache(maxsize=None)
def _vmem_block_budget():
    # Leave headroom inside the scoped limit for Mosaic internal scratch.
    return (_vmem_limit_bytes() * 3) // 4


@functools.lru_cache(maxsize=None)
def _num_tensorcores():
    """2 TensorCores per chip on v4 / v5p / v7x (megacore), 1 on v5e / v6e."""
    try:
        kind = jax.devices()[0].device_kind.lower()
        if any(tag in kind for tag in ("v7", "7x", "v4", "v5p")):
            return 2
    except Exception:
        pass
    return 1


# ~2-8 MiB per input block amortizes the ~0.35 us fixed per-grid-step overhead.
_TARGET_BLOCK_BYTES = 4 * 1024 * 1024


def _pick_row_block(rows, d, elem_bytes, n_streams, f32_temps):
    """Row-block size: ~_TARGET_BLOCK_BYTES per input stream, a multiple of the
    sublane packing (8 rows for 32-bit, 16 for 16-bit dtypes), capped so the
    double-buffered IO plus live f32 temporaries stay inside the VMEM budget,
    and (on multi-TC chips only) small enough to give each TensorCore work."""
    mult = 8 if elem_bytes >= 4 else 16
    per_row = 2 * n_streams * d * elem_bytes + f32_temps * d * 4
    rb_budget = _vmem_block_budget() // max(1, per_row)
    rb_target = _TARGET_BLOCK_BYTES // max(1, d * elem_bytes)
    rb = max(mult, (min(rb_budget, rb_target) // mult) * mult)
    rows_padded = pl.cdiv(rows, mult) * mult
    rb = min(rb, rows_padded)
    if _num_tensorcores() >= 2 and rows_padded >= 2 * mult:
        while rb > mult and pl.cdiv(rows_padded, rb) < 2:
            rb = max(mult, ((rb // 2) // mult) * mult)
    return rb


def _compiler_params():
    return pltpu.CompilerParams(
        dimension_semantics=("parallel",),
        vmem_limit_bytes=_vmem_limit_bytes(),
    )


# ---------------------------------------------------------------------------
# Kernels
# ---------------------------------------------------------------------------
def _ln_core(x_f32, eps):
    """Shared LayerNorm math: returns (x - mean, 1/(std + eps)) per row."""
    d = x_f32.shape[-1]
    mean = jnp.mean(x_f32, axis=-1, keepdims=True)
    diff = x_f32 - mean
    # PyTorch Tensor.std() defaults to the unbiased estimator (ddof=1).
    var = jnp.sum(diff * diff, axis=-1, keepdims=True) / (d - 1)
    std = jnp.sqrt(var)
    # Divide -> EUP reciprocal (exact, keeps tight tolerances) + VPU multiply.
    inv = pl.reciprocal(std + eps, approx=False)
    return diff, inv


def _layernorm_kernel(alpha_ref, bias_ref, x_ref, o_ref, *, eps):
    x = x_ref[...].astype(jnp.float32)
    diff, inv = _ln_core(x, eps)
    scale = alpha_ref[0, 0] * inv          # fold alpha into the per-row scale
    o_ref[...] = (diff * scale + bias_ref[0, 0]).astype(o_ref.dtype)


def _add_layernorm_kernel(alpha_ref, bias_ref, x_ref, y_ref, s_ref, o_ref, *, eps):
    s = x_ref[...].astype(jnp.float32) + y_ref[...].astype(jnp.float32)
    s_ref[...] = s.astype(s_ref.dtype)     # residual output (aliased onto x)
    diff, inv = _ln_core(s, eps)
    scale = alpha_ref[0, 0] * inv
    o_ref[...] = (diff * scale + bias_ref[0, 0]).astype(o_ref.dtype)


# ---------------------------------------------------------------------------
# Wrappers
# ---------------------------------------------------------------------------
def layernorm_pallas(x, alpha, bias, *, eps=1e-6, row_block=None):
    """LayerNorm over the last axis with scalar alpha/bias (PyTorch-tutorial
    semantics: unbiased std, eps added to the std)."""
    shape = x.shape
    d = shape[-1]
    assert d > 1, "unbiased std needs d_model > 1"
    rows = math.prod(shape[:-1])
    x2 = x.reshape(rows, d)
    elem = jnp.dtype(x.dtype).itemsize
    # NOTE: keep d_model a multiple of 128 in production (pad if needed) so the
    # output stores stay unmasked full-lane vst; any d is functionally legal
    # because the block spans the full feature dim.
    rb = row_block or _pick_row_block(rows, d, elem, n_streams=2, f32_temps=4)
    grid = (pl.cdiv(rows, rb),)

    alpha_s = jnp.asarray(alpha, jnp.float32).reshape(1, 1)
    bias_s = jnp.asarray(bias, jnp.float32).reshape(1, 1)

    blk = pl.BlockSpec((rb, d), lambda i: (i, 0))
    out = pl.pallas_call(
        functools.partial(_layernorm_kernel, eps=eps),
        out_shape=jax.ShapeDtypeStruct((rows, d), x.dtype),
        grid=grid,
        in_specs=[
            pl.BlockSpec(memory_space=pltpu.SMEM),   # alpha (1,1)
            pl.BlockSpec(memory_space=pltpu.SMEM),   # bias  (1,1)
            blk,
        ],
        out_specs=blk,
        compiler_params=_compiler_params(),
        cost_estimate=pl.CostEstimate(
            flops=6 * rows * d,
            transcendentals=2 * rows,
            bytes_accessed=2 * rows * d * elem,
        ),
    )(alpha_s, bias_s, x2)
    return out.reshape(shape)


def add_layernorm_pallas(x, y, alpha, bias, *, eps=1e-6, row_block=None):
    """Fused (x + y, LayerNorm(x + y)) in a single HBM pass.

    Returns (residual, normed).  The residual output is aliased onto `x`
    (written in place) to cut HBM footprint / allocator pressure."""
    shape = x.shape
    d = shape[-1]
    assert d > 1, "unbiased std needs d_model > 1"
    rows = math.prod(shape[:-1])
    x2 = x.reshape(rows, d)
    y2 = y.reshape(rows, d)
    elem = jnp.dtype(x.dtype).itemsize
    rb = row_block or _pick_row_block(rows, d, elem, n_streams=4, f32_temps=6)
    grid = (pl.cdiv(rows, rb),)

    alpha_s = jnp.asarray(alpha, jnp.float32).reshape(1, 1)
    bias_s = jnp.asarray(bias, jnp.float32).reshape(1, 1)

    blk = pl.BlockSpec((rb, d), lambda i: (i, 0))
    res, normed = pl.pallas_call(
        functools.partial(_add_layernorm_kernel, eps=eps),
        out_shape=(
            jax.ShapeDtypeStruct((rows, d), x.dtype),
            jax.ShapeDtypeStruct((rows, d), x.dtype),
        ),
        grid=grid,
        in_specs=[
            pl.BlockSpec(memory_space=pltpu.SMEM),
            pl.BlockSpec(memory_space=pltpu.SMEM),
            blk,
            blk,
        ],
        out_specs=[blk, blk],
        input_output_aliases={2: 0},   # x  ->  residual output (in place)
        compiler_params=_compiler_params(),
        cost_estimate=pl.CostEstimate(
            flops=8 * rows * d,
            transcendentals=2 * rows,
            bytes_accessed=4 * rows * d * elem,
        ),
    )(alpha_s, bias_s, x2, y2)
    return res.reshape(shape), normed.reshape(shape)


# ---------------------------------------------------------------------------
# EncoderBlock module
# ---------------------------------------------------------------------------
class EncoderBlock:
    """JAX/Pallas port of the PyTorch EncoderBlock (two pre-norm residuals)."""

    def __init__(self, self_attention, feed_forward, dropout=0.0):
        # TODO(synk): self_attention / feed_forward are constructor-injected in
        # the reference with no definition there; treated as external callables.
        self.self_attention = self_attention
        self.feed_forward = feed_forward
        # TODO(synk): nn.Dropout is treated in eval mode (identity).
        self.dropout = dropout
        # One LayerNorm per ResidualConnection; torch init: alpha=1, bias=0.
        self.norm_params = [(jnp.float32(1.0), jnp.float32(0.0)) for _ in range(2)]
        self.eps = 1e-6

    def __call__(self, x, src_mask, *, x_normed=None, out_norm=None):
        """Forward pass.

        x_normed : optional precomputed LayerNorm0(x) — supplied by a previous
                   block's fused output so the first LN needs no extra HBM pass.
        out_norm : optional (alpha, bias, eps) of the NEXT block's first
                   LayerNorm; if given, the output residual add is fused with
                   it and (x_out, norm_next(x_out)) is returned.
        """
        (a1, b1), (a2, b2) = self.norm_params
        # Residual connection 0: x + attn(norm(x), norm(x), norm(x), mask)
        h = x_normed if x_normed is not None else layernorm_pallas(
            x, a1, b1, eps=self.eps)
        attn_out = self.self_attention(h, h, h, src_mask)
        # Fused residual add + second pre-sublayer LayerNorm (one HBM pass).
        x1, h2 = add_layernorm_pallas(x, attn_out, a2, b2, eps=self.eps)
        # Residual connection 1: x1 + ffn(norm(x1))
        ff_out = self.feed_forward(h2)
        if out_norm is not None:
            a_next, b_next, eps_next = out_norm
            return add_layernorm_pallas(x1, ff_out, a_next, b_next, eps=eps_next)
        # Single / final block: plain-JAX add lets XLA fuse it into the FFN's
        # second-matmul epilogue (saves a full activation HBM round trip).
        return x1 + ff_out


# ---------------------------------------------------------------------------
# Demo sublayers (external dependencies, plain JAX) and reference
# ---------------------------------------------------------------------------
def make_self_attention(key, d_model):
    kq, kk, kv, ko = jax.random.split(key, 4)
    s = 0.05
    wq = s * jax.random.normal(kq, (d_model, d_model), jnp.float32)
    wk = s * jax.random.normal(kk, (d_model, d_model), jnp.float32)
    wv = s * jax.random.normal(kv, (d_model, d_model), jnp.float32)
    wo = s * jax.random.normal(ko, (d_model, d_model), jnp.float32)
    inv_sqrt_d = 1.0 / math.sqrt(d_model)

    def self_attention(q, k, v, mask):
        qh, kh, vh = q @ wq, k @ wk, v @ wv
        scores = jnp.einsum("bqd,bkd->bqk", qh, kh) * inv_sqrt_d
        if mask is not None:
            scores = jnp.where(mask > 0, scores, jnp.float32(-1e9))
        probs = jax.nn.softmax(scores, axis=-1)
        return jnp.einsum("bqk,bkd->bqd", probs, vh) @ wo

    return self_attention


def make_feed_forward(key, d_model, d_ff):
    k1, k2 = jax.random.split(key)
    w1 = 0.05 * jax.random.normal(k1, (d_model, d_ff), jnp.float32)
    w2 = 0.05 * jax.random.normal(k2, (d_ff, d_model), jnp.float32)

    def feed_forward(x):
        return jax.nn.relu(x @ w1) @ w2

    return feed_forward


def _ln_ref(x, alpha, bias, eps):
    x = x.astype(jnp.float32)
    mean = jnp.mean(x, axis=-1, keepdims=True)
    std = jnp.std(x, axis=-1, keepdims=True, ddof=1)  # unbiased, like torch .std()
    return alpha * (x - mean) / (std + eps) + bias


def _reference_encoder_block(x, src_mask, attn, ffn, norm_params, eps):
    (a1, b1), (a2, b2) = norm_params
    h = _ln_ref(x, a1, b1, eps)
    x1 = x + attn(h, h, h, src_mask)
    h2 = _ln_ref(x1, a2, b2, eps)
    return x1 + ffn(h2)


if __name__ == "__main__":
    key = jax.random.PRNGKey(0)
    k_x, k_attn, k_ffn = jax.random.split(key, 3)

    # Small, lane-dense shapes: d_model multiple of 128 keeps stores unmasked.
    batch, seq, d_model, d_ff = 2, 8, 128, 256

    x = jax.random.normal(k_x, (batch, seq, d_model), dtype=jnp.float32)
    src_mask = jnp.ones((batch, 1, seq), dtype=jnp.float32)

    self_attention = make_self_attention(k_attn, d_model)
    feed_forward = make_feed_forward(k_ffn, d_model, d_ff)

    block = EncoderBlock(self_attention, feed_forward, dropout=0.0)

    # --- single block (original module semantics) ---------------------------
    fwd = jax.jit(lambda xx, mm: block(xx, mm))
    out = jax.block_until_ready(fwd(x, src_mask))
    ref = _reference_encoder_block(
        x, src_mask, self_attention, feed_forward, block.norm_params, block.eps)
    assert out.shape == x.shape
    assert jnp.allclose(out, ref, atol=1e-4, rtol=1e-4), "single-block mismatch"

    # --- two stacked blocks: output add fused with next block's first LN ----
    block2 = EncoderBlock(self_attention, feed_forward, dropout=0.0)

    def stacked(xx, mm):
        a1, b1 = block2.norm_params[0]
        y, h_next = block(xx, mm, out_norm=(a1, b1, block2.eps))
        return block2(y, mm, x_normed=h_next)

    out2 = jax.block_until_ready(jax.jit(stacked)(x, src_mask))
    ref2 = _reference_encoder_block(
        ref, src_mask, self_attention, feed_forward, block2.norm_params, block2.eps)
    assert jnp.allclose(out2, ref2, atol=2e-4, rtol=2e-4), "stacked-block mismatch"

    print("KERNEL_OK")
</pallas_src>

<mosaic_0001>
module attributes {stable_mosaic.version = 11 : i64} {
  func.func @_layernorm_kernel(%arg0: i32, %arg1: memref<1x1xf32, #tpu.memory_space<smem>>, %arg2: memref<1x1xf32, #tpu.memory_space<smem>>, %arg3: memref<16x128xf32, #tpu.memory_space<vmem>>, %arg4: memref<16x128xf32, #tpu.memory_space<vmem>>) attributes {dimension_semantics = [#tpu.dimension_semantics<parallel>], iteration_bounds = array<i64: 1>, scalar_prefetch = 0 : i64, scratch_operands = 0 : i64, tpu.core_type = #tpu.core_type<tc>, window_params = [{transform_indices = @transform_0, window_bounds = array<i64: 1, 1>}, {transform_indices = @transform_1, window_bounds = array<i64: 1, 1>}, {transform_indices = @transform_2, window_bounds = array<i64: 16, 128>}, {transform_indices = @transform_3, window_bounds = array<i64: 16, 128>}]} {
    %c0 = arith.constant 0 : index
    %c0_0 = arith.constant 0 : index
    %0 = vector.load %arg3[%c0, %c0_0] : memref<16x128xf32, #tpu.memory_space<vmem>>, vector<16x128xf32>
    %cst = arith.constant dense<0.000000e+00> : vector<16xf32>
    %1 = vector.multi_reduction <add>, %0, %cst [1] : vector<16x128xf32> to vector<16xf32>
    %2 = vector.shape_cast %1 : vector<16xf32> to vector<16x1xf32>
    %cst_1 = arith.constant 1.280000e+02 : f32
    %3 = vector.broadcast %cst_1 : f32 to vector<16x1xf32>
    %4 = arith.divf %2, %3 : vector<16x1xf32>
    %5 = vector.broadcast %4 : vector<16x1xf32> to vector<16x128xf32>
    %6 = arith.subf %0, %5 : vector<16x128xf32>
    %7 = arith.mulf %6, %6 : vector<16x128xf32>
    %cst_2 = arith.constant dense<0.000000e+00> : vector<16xf32>
    %8 = vector.multi_reduction <add>, %7, %cst_2 [1] : vector<16x128xf32> to vector<16xf32>
    %9 = vector.shape_cast %8 : vector<16xf32> to vector<16x1xf32>
    %cst_3 = arith.constant 1.270000e+02 : f32
    %10 = vector.broadcast %cst_3 : f32 to vector<16x1xf32>
    %11 = arith.divf %9, %10 : vector<16x1xf32>
    %12 = math.sqrt %11 : vector<16x1xf32>
    %cst_4 = arith.constant 9.99999997E-7 : f32
    %13 = vector.broadcast %cst_4 : f32 to vector<16x1xf32>
    %14 = arith.addf %12, %13 : vector<16x1xf32>
    %15 = tpu.reciprocal %14 : vector<16x1xf32> -> vector<16x1xf32>
    %c0_5 = arith.constant 0 : index
    %c0_6 = arith.constant 0 : index
    %16 = memref.load %arg1[%c0_5, %c0_6] : memref<1x1xf32, #tpu.memory_space<smem>>
    %17 = vector.broadcast %16 : f32 to vector<16x1xf32>
    %18 = arith.mulf %17, %15 : vector<16x1xf32>
    %19 = vector.broadcast %18 : vector<16x1xf32> to vector<16x128xf32>
    %20 = arith.mulf %6, %19 : vector<16x128xf32>
    %c0_7 = arith.constant 0 : index
    %c0_8 = arith.constant 0 : index
    %21 = memref.load %arg2[%c0_7, %c0_8] : memref<1x1xf32, #tpu.memory_space<smem>>
    %22 = vector.broadcast %21 : f32 to vector<16x128xf32>
    %23 = arith.addf %20, %22 : vector<16x128xf32>
    %c0_9 = arith.constant 0 : index
    %c0_10 = arith.constant 0 : index
    %24 = vector.load %arg4[%c0_9, %c0_10] : memref<16x128xf32, #tpu.memory_space<vmem>>, vector<16x128xf32>
    tpu.vector_store %arg4[%c0_9, %c0_10], %23 {strides = array<i32>} : memref<16x128xf32, #tpu.memory_space<vmem>>, vector<16x128xf32>,
    return
  }
  func.func @transform_0(%arg0: i32) -> (i32, i32) {
    %c0_i32 = arith.constant 0 : i32
    %c0_i32_0 = arith.constant 0 : i32
    %c0_i32_1 = arith.constant 0 : i32
    return %c0_i32, %c0_i32_0 : i32, i32
  }
  func.func @transform_1(%arg0: i32) -> (i32, i32) {
    %c0_i32 = arith.constant 0 : i32
    %c0_i32_0 = arith.constant 0 : i32
    %c0_i32_1 = arith.constant 0 : i32
    return %c0_i32, %c0_i32_0 : i32, i32
  }
  func.func @transform_2(%arg0: i32) -> (i32, i32) {
    %c0_i32 = arith.constant 0 : i32
    %c0_i32_0 = arith.constant 0 : i32
    return %arg0, %c0_i32 : i32, i32
  }
  func.func @transform_3(%arg0: i32) -> (i32, i32) {
    %c0_i32 = arith.constant 0 : i32
    %c0_i32_0 = arith.constant 0 : i32
    return %arg0, %c0_i32 : i32, i32
  }
}

module attributes {stable_mosaic.version = 11 : i64} {
  func.func @_add_layernorm_kernel(%arg0: i32, %arg1: memref<1x1xf32, #tpu.memory_space<smem>>, %arg2: memref<1x1xf32, #tpu.memory_space<smem>>, %arg3: memref<16x128xf32, #tpu.memory_space<vmem>>, %arg4: memref<16x128xf32, #tpu.memory_space<vmem>>, %arg5: memref<16x128xf32, #tpu.memory_space<vmem>>, %arg6: memref<16x128xf32, #tpu.memory_space<vmem>>) attributes {dimension_semantics = [#tpu.dimension_semantics<parallel>], iteration_bounds = array<i64: 1>, scalar_prefetch = 0 : i64, scratch_operands = 0 : i64, tpu.core_type = #tpu.core_type<tc>, window_params = [{transform_indices = @transform_0, window_bounds = array<i64: 1, 1>}, {transform_indices = @transform_1, window_bounds = array<i64: 1, 1>}, {transform_indices = @transform_2, window_bounds = array<i64: 16, 128>}, {transform_indices = @transform_3, window_bounds = array<i64: 16, 128>}, {transform_indices = @transform_4, window_bounds = array<i64: 16, 128>}, {transform_indices = @transform_5, window_bounds = array<i64: 16, 128>}]} {
    %c0 = arith.constant 0 : index
    %c0_0 = arith.constant 0 : index
    %0 = vector.load %arg3[%c0, %c0_0] : memref<16x128xf32, #tpu.memory_space<vmem>>, vector<16x128xf32>
    %c0_1 = arith.constant 0 : index
    %c0_2 = arith.constant 0 : index
    %1 = vector.load %arg4[%c0_1, %c0_2] : memref<16x128xf32, #tpu.memory_space<vmem>>, vector<16x128xf32>
    %2 = arith.addf %0, %1 : vector<16x128xf32>
    %c0_3 = arith.constant 0 : index
    %c0_4 = arith.constant 0 : index
    %3 = vector.load %arg5[%c0_3, %c0_4] : memref<16x128xf32, #tpu.memory_space<vmem>>, vector<16x128xf32>
    tpu.vector_store %arg5[%c0_3, %c0_4], %2 {strides = array<i32>} : memref<16x128xf32, #tpu.memory_space<vmem>>, vector<16x128xf32>,
    %cst = arith.constant dense<0.000000e+00> : vector<16xf32>
    %4 = vector.multi_reduction <add>, %2, %cst [1] : vector<16x128xf32> to vector<16xf32>
    %5 = vector.shape_cast %4 : vector<16xf32> to vector<16x1xf32>
    %cst_5 = arith.constant 1.280000e+02 : f32
    %6 = vector.broadcast %cst_5 : f32 to vector<16x1xf32>
    %7 = arith.divf %5, %6 : vector<16x1xf32>
    %8 = vector.broadcast %7 : vector<16x1xf32> to vector<16x128xf32>
    %9 = arith.subf %2, %8 : vector<16x128xf32>
    %10 = arith.mulf %9, %9 : vector<16x128xf32>
    %cst_6 = arith.constant dense<0.000000e+00> : vector<16xf32>
    %11 = vector.multi_reduction <add>, %10, %cst_6 [1] : vector<16x128xf32> to vector<16xf32>
    %12 = vector.shape_cast %11 : vector<16xf32> to vector<16x1xf32>
    %cst_7 = arith.constant 1.270000e+02 : f32
    %13 = vector.broadcast %cst_7 : f32 to vector<16x1xf32>
    %14 = arith.divf %12, %13 : vector<16x1xf32>
    %15 = math.sqrt %14 : vector<16x1xf32>
    %cst_8 = arith.constant 9.99999997E-7 : f32
    %16 = vector.broadcast %cst_8 : f32 to vector<16x1xf32>
    %17 = arith.addf %15, %16 : vector<16x1xf32>
    %18 = tpu.reciprocal %17 : vector<16x1xf32> -> vector<16x1xf32>
    %c0_9 = arith.constant 0 : index
    %c0_10 = arith.constant 0 : index
    %19 = memref.load %arg1[%c0_9, %c0_10] : memref<1x1xf32, #tpu.memory_space<smem>>
    %20 = vector.broadcast %19 : f32 to vector<16x1xf32>
    %21 = arith.mulf %20, %18 : vector<16x1xf32>
    %22 = vector.broadcast %21 : vector<16x1xf32> to vector<16x128xf32>
    %23 = arith.mulf %9, %22 : vector<16x128xf32>
    %c0_11 = arith.constant 0 : index
    %c0_12 = arith.constant 0 : index
    %24 = memref.load %arg2[%c0_11, %c0_12] : memref<1x1xf32, #tpu.memory_space<smem>>
    %25 = vector.broadcast %24 : f32 to vector<16x128xf32>
    %26 = arith.addf %23, %25 : vector<16x128xf32>
    %c0_13 = arith.constant 0 : index
    %c0_14 = arith.constant 0 : index
    %27 = vector.load %arg6[%c0_13, %c0_14] : memref<16x128xf32, #tpu.memory_space<vmem>>, vector<16x128xf32>
    tpu.vector_store %arg6[%c0_13, %c0_14], %26 {strides = array<i32>} : memref<16x128xf32, #tpu.memory_space<vmem>>, vector<16x128xf32>,
    return
  }
  func.func @transform_0(%arg0: i32) -> (i32, i32) {
    %c0_i32 = arith.constant 0 : i32
    %c0_i32_0 = arith.constant 0 : i32
    %c0_i32_1 = arith.constant 0 : i32
    return %c0_i32, %c0_i32_0 : i32, i32
  }
  func.func @transform_1(%arg0: i32) -> (i32, i32) {
    %c0_i32 = arith.constant 0 : i32
    %c0_i32_0 = arith.constant 0 : i32
    %c0_i32_1 = arith.constant 0 : i32
    return %c0_i32, %c0_i32_0 : i32, i32
  }
  func.func @transform_2(%arg0: i32) -> (i32, i32) {
    %c0_i32 = arith.constant 0 : i32
    %c0_i32_0 = arith.constant 0 : i32
    return %arg0, %c0_i32 : i32, i32
  }
  func.func @transform_3(%arg0: i32) -> (i32, i32) {
    %c0_i32 = arith.constant 0 : i32
    %c0_i32_0 = arith.constant 0 : i32
    return %arg0, %c0_i32 : i32, i32
  }
  func.func @transform_4(%arg0: i32) -> (i32, i32) {
    %c0_i32 = arith.constant 0 : i32
    %c0_i32_0 = arith.constant 0 : i32
    return %arg0, %c0_i32 : i32, i32
  }
  func.func @transform_5(%arg0: i32) -> (i32, i32) {
    %c0_i32 = arith.constant 0 : i32
    %c0_i32_0 = arith.constant 0 : i32
    return %arg0, %c0_i32 : i32, i32
  }
}

</mosaic_0001>

<llo_original>
// kernel: _lambda_.2
$region0: #{_lambda_.2}
  #allocation0 [shape = 'u32[]', space=smem, size = 0x4, offset = 0x4, fixed_abs, tag = 'smem constant byte address 0x4 - core index']
  #allocation1 [shape = 'u32[72,128]{1,0:T(1,128)}', space=vmem, size = 0x9000, scoped, tag = 'internal scratch']
  #allocation2 [shape = 'f32[1,1]{1,0:T(1,128)S(6)}', space=smem, size = 0x200, scoped, tag = 'scoped memory for _lambda_.2']
  #allocation3 [shape = 'f32[1,1]{1,0:T(1,128)S(6)}', space=smem, size = 0x200, scoped, tag = 'scoped memory for _lambda_.2']
  %s0 = inlined_call_operand.<no memory space> [shape: f32[1,1], index: 0, kind: input, shape index: {}]
  %s1 = inlined_call_operand.<no memory space> [shape: f32[1,1], index: 1, kind: input, shape index: {}]
  %s2 = inlined_call_operand.vmem [shape: f32[16,128], index: 2, kind: input, shape index: {}]
  %s3 = inlined_call_operand.vmem [shape: f32[16,128], index: 3, kind: output, shape index: {}]
  %s4 = sld [smem:[#allocation0]]
  $region22: #{_lambda_.2} parent=0
    _
  %s6 = ssub.s32 1, %s4
  %s7 = scalar_select 0, %s6, %s4
  %8 = sst [smem:[#allocation2]] %s0
  %9 = sst [smem:[#allocation3]] %s1
  // Predicated region
  $region2: #{_lambda_.2} parent=0 // pred_check
    _
  $region3: #{_lambda_.2} parent=0 // pred_check_branch
    %11 = sbr.rel (0) target = $region5
  $region4: #{_lambda_.2} parent=0 // pred_region
    _
  $region5: #{_lambda_.2} parent=0 // pred_fallthru
    _
  // Predicated region
  $region6: #{_lambda_.2} parent=0 // pred_check
    _
  $region7: #{_lambda_.2} parent=0 // pred_check_branch
    %13 = sbr.rel (0) target = $region9
  $region8: #{_lambda_.2} parent=0 // pred_region
    _
  $region9: #{_lambda_.2} parent=0 // pred_fallthru
    _
  // Predicated region
  $region10: #{_lambda_.2} parent=0 // pred_check
    _
  $region11: #{_lambda_.2} parent=0 // pred_check_branch
    %15 = sbr.rel (0) target = $region13
  $region12: #{_lambda_.2} parent=0 // pred_region
    _
  $region13: #{_lambda_.2} parent=0 // pred_fallthru
    _
  %v16 = vld [vmem:[%s2] sm:$0xff]
  %v17 = vld [vmem:[%s2 + $0x8] sm:$0xff]
  %18 = vadd.xlane.f32.xlu0 %v16
  %v19 = vpop.xlane.xlu0 %18
  %20 = vadd.xlane.f32.xlu0 %v17
  %v21 = vpop.xlane.xlu0 %20
  %v22 = vrcp.pop 128.0
  %v23 = vmul.f32 128.0, %v22
  %v24 = vsub.f32 1.0, %v23
  %v25 = vmul.f32 %v22, %v24
  %v26 = vadd.f32 %v22, %v25
  %vm27 = vweird.f32 %v22
  %v28 = vsel %vm27, %v22, %v26
  %v29 = vmul.f32 %v19, %v28
  %v30 = vmul.f32 %v21, %v28
  %v31 = vsub.f32 %v16, %v29
  %v32 = vsub.f32 %v17, %v30
  %v33 = vmul.f32 %v31, %v31
  %v34 = vmul.f32 %v32, %v32
  %35 = vadd.xlane.f32.xlu0 %v33
  %v36 = vpop.xlane.xlu0 %35
  %37 = vadd.xlane.f32.xlu0 %v34
  %v38 = vpop.xlane.xlu0 %37
  %v39 = vrcp.pop 127.0
  %v40 = vmul.f32 127.0, %v39
  %v41 = vsub.f32 1.0, %v40
  %v42 = vmul.f32 %v39, %v41
  %v43 = vadd.f32 %v39, %v42
  %vm44 = vweird.f32 %v39
  %v45 = vsel %vm44, %v39, %v43
  %v46 = vmul.f32 %v36, %v45
  %v47 = vmul.f32 %v38, %v45
  %v48 = vrsqrt.pop %v46
  %v49 = vmul.f32 %v48, %v46
  %v50 = vmul.f32 %v49, %v48
  %v51 = vmul.f32 0.5, %v50
  %v52 = vsub.f32 1.5, %v51
  %v53 = vmul.f32 %v48, %v52
  %v54 = vmul.f32 %v46, %v53
  %vm55 = vcmp.eq.f32.partialorder %v46, inf
  %v56 = vsel %vm55, %v46, %v54
  %vm57 = vcmp.eq.f32.partialorder %v46, 0.0
  %v58 = vand.u32 %v46, 2147483648
  %v59 = vsel %vm57, %v58, %v56
  %v60 = vrsqrt.pop %v47
  %v61 = vmul.f32 %v60, %v47
  %v62 = vmul.f32 %v61, %v60
  %v63 = vmul.f32 0.5, %v62
  %v64 = vsub.f32 1.5, %v63
  %v65 = vmul.f32 %v60, %v64
  %v66 = vmul.f32 %v47, %v65
  %vm67 = vcmp.eq.f32.partialorder %v47, inf
  %v68 = vsel %vm67, %v47, %v66
  %vm69 = vcmp.eq.f32.partialorder %v47, 0.0
  %v70 = vand.u32 %v47, 2147483648
  %v71 = vsel %vm69, %v70, %v68
  %v72 = vadd.f32 %v59, 1e-06
  %v73 = vadd.f32 %v71, 1e-06
  %v74 = vrcp.pop %v72
  %v75 = vmul.f32 %v72, %v74
  %v76 = vsub.f32 1.0, %v75
  %v77 = vmul.f32 %v74, %v76
  %v78 = vadd.f32 %v74, %v77
  %vm79 = vweird.f32 %v72
  %vm80 = vweird.f32 %v74
  %vm81 = vmor %vm79, %vm80
  %v82 = vsel %vm81, %v74, %v78
  %v83 = vand.u32 2147483647, %v72
  %vm84 = vcmp.eq.f32.partialorder %v83, 8.507059e+37
  %v85 = vand.u32 %v72, 2147483648
  %v86 = vor.u32 1.1754944e-38, %v85
  %v87 = vsel %vm84, %v86, %v82
  %v88 = vrcp.pop %v73
  %v89 = vmul.f32 %v73, %v88
  %v90 = vsub.f32 1.0, %v89
  %v91 = vmul.f32 %v88, %v90
  %v92 = vadd.f32 %v88, %v91
  %vm93 = vweird.f32 %v73
  %vm94 = vweird.f32 %v88
  %vm95 = vmor %vm93, %vm94
  %v96 = vsel %vm95, %v88, %v92
  %v97 = vand.u32 2147483647, %v73
  %vm98 = vcmp.eq.f32.partialorder %v97, 8.507059e+37
  %v99 = vand.u32 %v73, 2147483648
  %v100 = vor.u32 1.1754944e-38, %v99
  %v101 = vsel %vm98, %v100, %v96
  %s102 = sld [smem:[#allocation2]]
  %v103 = vstv %s102
  %v104 = vmul.f32 %v103, %v87
  %v105 = vmul.f32 %v103, %v101
  %v106 = vmul.f32 %v31, %v104
  %v107 = vmul.f32 %v32, %v105
  %s108 = sld [smem:[#allocation3]]
  %v109 = vstv %s108
  %v110 = vadd.f32 %v106, %v109
  %v111 = vadd.f32 %v107, %v109
  %112 = vst [vmem:[%s3] sm:$0xff] %v110
  %113 = vst [vmem:[%s3 + $0x8] sm:$0xff] %v111
  // Predicated region
  $region14: #{_lambda_.2} parent=0 // pred_check
    _
  $region15: #{_lambda_.2} parent=0 // pred_check_branch
    %115 = sbr.rel (0) target = $region17
  $region16: #{_lambda_.2} parent=0 // pred_region
    _
  $region17: #{_lambda_.2} parent=0 // pred_fallthru
    _
  // Predicated region
  $region18: #{_lambda_.2} parent=0 // pred_check
    _
  $region19: #{_lambda_.2} parent=0 // pred_check_branch
    %117 = sbr.rel (0) target = $region21
  $region20: #{_lambda_.2} parent=0 // pred_region
    _
  $region21: #{_lambda_.2} parent=0 // pred_fallthru
    _

// kernel: _lambda_.3
$region0: #{_lambda_.3}
  #allocation0 [shape = 'u32[]', space=smem, size = 0x4, offset = 0x4, fixed_abs, tag = 'smem constant byte address 0x4 - core index']
  #allocation1 [shape = 'u32[72,128]{1,0:T(1,128)}', space=vmem, size = 0x9000, scoped, tag = 'internal scratch']
  #allocation2 [shape = 'f32[1,1]{1,0:T(1,128)S(6)}', space=smem, size = 0x200, scoped, tag = 'scoped memory for _lambda_.3']
  #allocation3 [shape = 'f32[1,1]{1,0:T(1,128)S(6)}', space=smem, size = 0x200, scoped, tag = 'scoped memory for _lambda_.3']
  %s0 = inlined_call_operand.<no memory space> [shape: f32[1,1], index: 0, kind: input, shape index: {}]
  %s1 = inlined_call_operand.<no memory space> [shape: f32[1,1], index: 1, kind: input, shape index: {}]
  %s2 = inlined_call_operand.vmem [shape: f32[16,128], index: 2, kind: input, shape index: {}, may-alias: {2,4}]
  %s3 = inlined_call_operand.vmem [shape: f32[16,128], index: 3, kind: input, shape index: {}]
  %s4 = inlined_call_operand.vmem [shape: f32[16,128], index: 4, kind: output, shape index: {0}, may-alias: {2,4}]
  %s5 = inlined_call_operand.vmem [shape: f32[16,128], index: 5, kind: output, shape index: {1}]
  %6 = xla_tuple %s4, %s5
  %s7 = sld [smem:[#allocation0]]
  $region34: #{_lambda_.3} parent=0
    _
  %s9 = ssub.s32 1, %s7
  %s10 = scalar_select 0, %s9, %s7
  %11 = sst [smem:[#allocation2]] %s0
  %12 = sst [smem:[#allocation3]] %s1
  // Predicated region
  $region2: #{_lambda_.3} parent=0 // pred_check
    _
  $region3: #{_lambda_.3} parent=0 // pred_check_branch
    %14 = sbr.rel (0) target = $region5
  $region4: #{_lambda_.3} parent=0 // pred_region
    _
  $region5: #{_lambda_.3} parent=0 // pred_fallthru
    _
  // Predicated region
  $region6: #{_lambda_.3} parent=0 // pred_check
    _
  $region7: #{_lambda_.3} parent=0 // pred_check_branch
    %16 = sbr.rel (0) target = $region9
  $region8: #{_lambda_.3} parent=0 // pred_region
    _
  $region9: #{_lambda_.3} parent=0 // pred_fallthru
    _
  // Predicated region
  $region10: #{_lambda_.3} parent=0 // pred_check
    _
  $region11: #{_lambda_.3} parent=0 // pred_check_branch
    %18 = sbr.rel (0) target = $region13
  $region12: #{_lambda_.3} parent=0 // pred_region
    _
  $region13: #{_lambda_.3} parent=0 // pred_fallthru
    _
  // Predicated region
  $region14: #{_lambda_.3} parent=0 // pred_check
    _
  $region15: #{_lambda_.3} parent=0 // pred_check_branch
    %20 = sbr.rel (0) target = $region17
  $region16: #{_lambda_.3} parent=0 // pred_region
    _
  $region17: #{_lambda_.3} parent=0 // pred_fallthru
    _
  %v21 = vld [vmem:[%s2] sm:$0xff]
  %v22 = vld [vmem:[%s2 + $0x8] sm:$0xff]
  %v23 = vld [vmem:[%s3] sm:$0xff]
  %v24 = vld [vmem:[%s3 + $0x8] sm:$0xff]
  %v25 = vadd.f32 %v21, %v23
  %v26 = vadd.f32 %v22, %v24
  %27 = vst [vmem:[%s4] sm:$0xff] %v25
  %28 = vst [vmem:[%s4 + $0x8] sm:$0xff] %v26
  %29 = vadd.xlane.f32.xlu0 %v25
  %v30 = vpop.xlane.xlu0 %29
  %31 = vadd.xlane.f32.xlu0 %v26
  %v32 = vpop.xlane.xlu0 %31
  %v33 = vrcp.pop 128.0
  %v34 = vmul.f32 128.0, %v33
  %v35 = vsub.f32 1.0, %v34
  %v36 = vmul.f32 %v33, %v35
  %v37 = vadd.f32 %v33, %v36
  %vm38 = vweird.f32 %v33
  %v39 = vsel %vm38, %v33, %v37
  %v40 = vmul.f32 %v30, %v39
  %v41 = vmul.f32 %v32, %v39
  %v42 = vsub.f32 %v25, %v40
  %v43 = vsub.f32 %v26, %v41
  %v44 = vmul.f32 %v42, %v42
  %v45 = vmul.f32 %v43, %v43
  %46 = vadd.xlane.f32.xlu0 %v44
  %v47 = vpop.xlane.xlu0 %46
  %48 = vadd.xlane.f32.xlu0 %v45
  %v49 = vpop.xlane.xlu0 %48
  %v50 = vrcp.pop 127.0
  %v51 = vmul.f32 127.0, %v50
  %v52 = vsub.f32 1.0, %v51
  %v53 = vmul.f32 %v50, %v52
  %v54 = vadd.f32 %v50, %v53
  %vm55 = vweird.f32 %v50
  %v56 = vsel %vm55, %v50, %v54
  %v57 = vmul.f32 %v47, %v56
  %v58 = vmul.f32 %v49, %v56
  %v59 = vrsqrt.pop %v57
  %v60 = vmul.f32 %v59, %v57
  %v61 = vmul.f32 %v60, %v59
  %v62 = vmul.f32 0.5, %v61
  %v63 = vsub.f32 1.5, %v62
  %v64 = vmul.f32 %v59, %v63
  %v65 = vmul.f32 %v57, %v64
  %vm66 = vcmp.eq.f32.partialorder %v57, inf
  %v67 = vsel %vm66, %v57, %v65
  %vm68 = vcmp.eq.f32.partialorder %v57, 0.0
  %v69 = vand.u32 %v57, 2147483648
  %v70 = vsel %vm68, %v69, %v67
  %v71 = vrsqrt.pop %v58
  %v72 = vmul.f32 %v71, %v58
  %v73 = vmul.f32 %v72, %v71
  %v74 = vmul.f32 0.5, %v73
  %v75 = vsub.f32 1.5, %v74
  %v76 = vmul.f32 %v71, %v75
  %v77 = vmul.f32 %v58, %v76
  %vm78 = vcmp.eq.f32.partialorder %v58, inf
  %v79 = vsel %vm78, %v58, %v77
  %vm80 = vcmp.eq.f32.partialorder %v58, 0.0
  %v81 = vand.u32 %v58, 2147483648
  %v82 = vsel %vm80, %v81, %v79
  %v83 = vadd.f32 %v70, 1e-06
  %v84 = vadd.f32 %v82, 1e-06
  %v85 = vrcp.pop %v83
  %v86 = vmul.f32 %v83, %v85
  %v87 = vsub.f32 1.0, %v86
  %v88 = vmul.f32 %v85, %v87
  %v89 = vadd.f32 %v85, %v88
  %vm90 = vweird.f32 %v83
  %vm91 = vweird.f32 %v85
  %vm92 = vmor %vm90, %vm91
  %v93 = vsel %vm92, %v85, %v89
  %v94 = vand.u32 2147483647, %v83
  %vm95 = vcmp.eq.f32.partialorder %v94, 8.507059e+37
  %v96 = vand.u32 %v83, 2147483648
  %v97 = vor.u32 1.1754944e-38, %v96
  %v98 = vsel %vm95, %v97, %v93
  %v99 = vrcp.pop %v84
  %v100 = vmul.f32 %v84, %v99
  %v101 = vsub.f32 1.0, %v100
  %v102 = vmul.f32 %v99, %v101
  %v103 = vadd.f32 %v99, %v102
  %vm104 = vweird.f32 %v84
  %vm105 = vweird.f32 %v99
  %vm106 = vmor %vm104, %vm105
  %v107 = vsel %vm106, %v99, %v103
  %v108 = vand.u32 2147483647, %v84
  %vm109 = vcmp.eq.f32.partialorder %v108, 8.507059e+37
  %v110 = vand.u32 %v84, 2147483648
  %v111 = vor.u32 1.1754944e-38, %v110
  %v112 = vsel %vm109, %v111, %v107
  %s113 = sld [smem:[#allocation2]]
  %v114 = vstv %s113
  %v115 = vmul.f32 %v114, %v98
  %v116 = vmul.f32 %v114, %v112
  %v117 = vmul.f32 %v42, %v115
  %v118 = vmul.f32 %v43, %v116
  %s119 = sld [smem:[#allocation3]]
  %v120 = vstv %s119
  %v121 = vadd.f32 %v117, %v120
  %v122 = vadd.f32 %v118, %v120
  %123 = vst [vmem:[%s5] sm:$0xff] %v121
  %124 = vst [vmem:[%s5 + $0x8] sm:$0xff] %v122
  // Predicated region
  $region18: #{_lambda_.3} parent=0 // pred_check
    _
  $region19: #{_lambda_.3} parent=0 // pred_check_branch
    %126 = sbr.rel (0) target = $region21
  $region20: #{_lambda_.3} parent=0 // pred_region
    _
  $region21: #{_lambda_.3} parent=0 // pred_fallthru
    _
  // Predicated region
  $region22: #{_lambda_.3} parent=0 // pred_check
    _
  $region23: #{_lambda_.3} parent=0 // pred_check_branch
    %128 = sbr.rel (0) target = $region25
  $region24: #{_lambda_.3} parent=0 // pred_region
    _
  $region25: #{_lambda_.3} parent=0 // pred_fallthru
    _
  // Predicated region
  $region26: #{_lambda_.3} parent=0 // pred_check
    _
  $region27: #{_lambda_.3} parent=0 // pred_check_branch
    %130 = sbr.rel (0) target = $region29
  $region28: #{_lambda_.3} parent=0 // pred_region
    _
  $region29: #{_lambda_.3} parent=0 // pred_fallthru
    _
  // Predicated region
  $region30: #{_lambda_.3} parent=0 // pred_check
    _
  $region31: #{_lambda_.3} parent=0 // pred_check_branch
    %132 = sbr.rel (0) target = $region33
  $region32: #{_lambda_.3} parent=0 // pred_region
    _
  $region33: #{_lambda_.3} parent=0 // pred_fallthru
    _

</llo_original>
